<compile_context>
chip_gen: v6e
topology: v6e:2x2x1
jax: 0.10.0
libtpu: 0.0.40
codegen_flags: <defaults>
</compile_context>

<pallas_src>
import functools

import jax
import jax.numpy as jnp
from jax.experimental import pallas as pl
from jax.experimental.pallas import tpu as pltpu


def _round_up(x, m):
    return ((x + m - 1) // m) * m


def fasttext_kernel(idx_ref, wf_ref, b_ref, out_ref):
    """idx_ref: (TB,S) i32 | wf_ref: (V,O_pad) bf16 | b_ref: (1,O_pad) f32
       out_ref: (TB,O_pad) f32."""
    idx = idx_ref[...]                                    # (TB, S) int32
    TB, S = idx.shape
    V = wf_ref.shape[0]

    # Bag-of-words counts, 2-D formulation: lane axis = V, statically unrolled
    # loop over the fixed bag length S.  The iota is a single (1, V) row that
    # broadcasts against idx[:, s:s+1]; each step is one (TB, V) VPU
    # compare + add -- no 3-D one-hot, no XLU reduction, minimal vreg pressure.
    iota_v = jax.lax.broadcasted_iota(jnp.int32, (1, V), 1)
    counts = jnp.zeros((TB, V), jnp.float32)
    for s in range(S):                                    # static unroll
        counts = counts + (idx[:, s:s + 1] == iota_v).astype(jnp.float32)
    # f32 accumulation kept on purpose (v5e has no bf16 VALU).  Counts <= S
    # are exact small integers, so the bf16 cast below is lossless.

    # Single fused MXU matmul.  wf = (emb @ W^T) / S is pre-fused at model
    # load, so counts @ wf == mean_embedding @ W^T.  The fc bias is added
    # separately in f32 (exact, not routed through the bf16 table).
    out_ref[...] = (
        jnp.dot(counts.astype(jnp.bfloat16), wf_ref[...],
                preferred_element_type=jnp.float32)
        + b_ref[...]
    )


def prepare_fasttext_weights(emb, w, b, seq_len):
    """One-time (model-load) weight fusion -- keep OFF the per-call hot path.

    ((counts / S) @ emb) @ W^T + b  ==  counts @ ((emb @ W^T) / S)  +  b
    Exact because each 2-D-input EmbeddingBag bag has exactly S tokens.
    """
    V, E = emb.shape
    O = w.shape[0]
    o_pad = _round_up(O, 128)                     # lane-dense output width
    wf = (emb.astype(jnp.float32) @ w.T.astype(jnp.float32)) * (1.0 / seq_len)
    wf = jnp.pad(wf, ((0, 0), (0, o_pad - O))).astype(jnp.bfloat16)   # (V, o_pad)
    b_pad = jnp.pad(b.astype(jnp.float32), (0, o_pad - O)).reshape(1, o_pad)
    return wf, b_pad


@functools.partial(jax.jit, static_argnames=("dim_out", "block_b"))
def fasttext_forward(x, wf, b_pad, *, dim_out, block_b=256):
    """x: (B,S) int tokens; wf: (V,o_pad) bf16 fused weight; b_pad: (1,o_pad) f32."""
    B, S = x.shape
    V, o_pad = wf.shape

    # ---- batch tiling -------------------------------------------------------
    B8 = _round_up(B, 8)
    tb = min(block_b, B8)
    # v7x has 2 TensorCores: give the "parallel" batch axis >=2 grid steps
    # whenever the batch is big enough to split on multiple-of-8 sublanes.
    if B8 >= 16 and B8 // tb < 2:
        tb = _round_up((B8 + 1) // 2, 8)
    b_tot = _round_up(B8, tb)

    idx = x.astype(jnp.int32)
    if b_tot != B:
        idx = jnp.pad(idx, ((0, b_tot - B), (0, 0)))   # padded rows sliced off

    # ---- explicit VMEM budget ----------------------------------------------
    # Resident fused weight (allow 2x for pipelining) + double-buffered idx /
    # bias / output tiles + generous headroom for compiler internal scratch.
    vmem_bytes = (2 * V * o_pad * 2          # wf tile, bf16
                  + 2 * tb * S * 4           # idx tile, i32
                  + 2 * o_pad * 4            # bias tile, f32
                  + 2 * tb * o_pad * 4       # out tile, f32
                  + (8 << 20))               # headroom
    vmem_bytes = int(min(vmem_bytes, 96 << 20))

    out = pl.pallas_call(
        fasttext_kernel,
        out_shape=jax.ShapeDtypeStruct((b_tot, o_pad), jnp.float32),
        grid_spec=pltpu.PrefetchScalarGridSpec(
            num_scalar_prefetch=0,
            grid=(b_tot // tb,),
            in_specs=[
                pl.BlockSpec((tb, S), lambda i: (i, 0)),        # token ids
                pl.BlockSpec((V, o_pad), lambda i: (0, 0)),     # fused weight (resident)
                pl.BlockSpec((1, o_pad), lambda i: (0, 0)),     # f32 bias row
            ],
            out_specs=pl.BlockSpec((tb, o_pad), lambda i: (i, 0)),
        ),
        compiler_params=pltpu.CompilerParams(
            dimension_semantics=("parallel",),
            vmem_limit_bytes=vmem_bytes),
    )(idx, wf, b_pad)

    return out[:B, :dim_out]


def fasttext_reference(x, emb, w, b):
    gathered = jnp.take(emb, x, axis=0)          # (B, S, E)
    mean_emb = jnp.mean(gathered, axis=1)        # (B, E)
    return mean_emb @ w.T + b[None, :]


if __name__ == "__main__":
    # FastTextConfig(max_feature=128, embedding_size=32, dim_out=8)
    MAX_FEATURE = 128
    EMBEDDING_SIZE = 32
    DIM_OUT = 8
    BATCH = 8
    SEQ = 16

    key = jax.random.PRNGKey(0)
    k_idx, k_emb, k_w, k_b = jax.random.split(key, 4)

    x = jax.random.randint(k_idx, (BATCH, SEQ), 0, MAX_FEATURE, dtype=jnp.int32)
    emb = jax.random.normal(k_emb, (MAX_FEATURE, EMBEDDING_SIZE), jnp.float32) * 0.1
    w = jax.random.normal(k_w, (DIM_OUT, EMBEDDING_SIZE), jnp.float32) * 0.1
    b = jax.random.normal(k_b, (DIM_OUT,), jnp.float32) * 0.1

    # One-time weight fusion (model-load time), hoisted off the hot path.
    wf, b_pad = prepare_fasttext_weights(emb, w, b, SEQ)
    wf = jax.block_until_ready(wf)
    b_pad = jax.block_until_ready(b_pad)

    out = fasttext_forward(x, wf, b_pad, dim_out=DIM_OUT)
    out = jax.block_until_ready(out)

    ref = fasttext_reference(x, emb, w, b)
    assert out.shape == (BATCH, DIM_OUT)
    # Fused weight is stored in bf16 -> tolerance sized for bf16 rounding
    # (bias is exact f32 now).
    max_diff = jnp.max(jnp.abs(out - ref))
    assert jnp.allclose(out, ref, atol=2e-2, rtol=2e-2), (
        f"mismatch vs reference: max abs diff {max_diff}")
    print("KERNEL_OK")
</pallas_src>

<mosaic_0001>
module attributes {stable_mosaic.version = 11 : i64} {
  func.func @fasttext_kernel(%arg0: i32, %arg1: memref<8x16xi32, #tpu.memory_space<vmem>>, %arg2: memref<128x128xbf16, #tpu.memory_space<vmem>>, %arg3: memref<1x128xf32, #tpu.memory_space<vmem>>, %arg4: memref<8x128xf32, #tpu.memory_space<vmem>>) attributes {dimension_semantics = [#tpu.dimension_semantics<parallel>], iteration_bounds = array<i64: 1>, scalar_prefetch = 0 : i64, scratch_operands = 0 : i64, tpu.core_type = #tpu.core_type<tc>, window_params = [{transform_indices = @transform_0, window_bounds = array<i64: 8, 16>}, {pipeline_mode = #tpu.pipeline_mode<synchronous>, transform_indices = @transform_1, window_bounds = array<i64: 128, 128>}, {pipeline_mode = #tpu.pipeline_mode<synchronous>, transform_indices = @transform_2, window_bounds = array<i64: 1, 128>}, {transform_indices = @transform_3, window_bounds = array<i64: 8, 128>}]} {
    %c0 = arith.constant 0 : index
    %c0_0 = arith.constant 0 : index
    %0 = vector.load %arg1[%c0, %c0_0] : memref<8x16xi32, #tpu.memory_space<vmem>>, vector<8x16xi32>
    %1 = tpu.iota {dimensions = array<i32: 1>} : vector<1x128xi32>
    %cst = arith.constant 0.000000e+00 : f32
    %2 = vector.broadcast %cst : f32 to vector<8x128xf32>
    %3 = vector.extract_strided_slice %0 {offsets = [0, 0], sizes = [8, 1], strides = [1, 1]} : vector<8x16xi32> to vector<8x1xi32>
    %4 = vector.broadcast %3 : vector<8x1xi32> to vector<8x128xi32>
    %5 = vector.broadcast %1 : vector<1x128xi32> to vector<8x128xi32>
    %6 = arith.cmpi eq, %4, %5 : vector<8x128xi32>
    %7 = arith.extui %6 : vector<8x128xi1> to vector<8x128xi32>
    %8 = arith.sitofp %7 : vector<8x128xi32> to vector<8x128xf32>
    %9 = arith.addf %2, %8 : vector<8x128xf32>
    %10 = vector.extract_strided_slice %0 {offsets = [0, 1], sizes = [8, 1], strides = [1, 1]} : vector<8x16xi32> to vector<8x1xi32>
    %11 = vector.broadcast %10 : vector<8x1xi32> to vector<8x128xi32>
    %12 = vector.broadcast %1 : vector<1x128xi32> to vector<8x128xi32>
    %13 = arith.cmpi eq, %11, %12 : vector<8x128xi32>
    %14 = arith.extui %13 : vector<8x128xi1> to vector<8x128xi32>
    %15 = arith.sitofp %14 : vector<8x128xi32> to vector<8x128xf32>
    %16 = arith.addf %9, %15 : vector<8x128xf32>
    %17 = vector.extract_strided_slice %0 {offsets = [0, 2], sizes = [8, 1], strides = [1, 1]} : vector<8x16xi32> to vector<8x1xi32>
    %18 = vector.broadcast %17 : vector<8x1xi32> to vector<8x128xi32>
    %19 = vector.broadcast %1 : vector<1x128xi32> to vector<8x128xi32>
    %20 = arith.cmpi eq, %18, %19 : vector<8x128xi32>
    %21 = arith.extui %20 : vector<8x128xi1> to vector<8x128xi32>
    %22 = arith.sitofp %21 : vector<8x128xi32> to vector<8x128xf32>
    %23 = arith.addf %16, %22 : vector<8x128xf32>
    %24 = vector.extract_strided_slice %0 {offsets = [0, 3], sizes = [8, 1], strides = [1, 1]} : vector<8x16xi32> to vector<8x1xi32>
    %25 = vector.broadcast %24 : vector<8x1xi32> to vector<8x128xi32>
    %26 = vector.broadcast %1 : vector<1x128xi32> to vector<8x128xi32>
    %27 = arith.cmpi eq, %25, %26 : vector<8x128xi32>
    %28 = arith.extui %27 : vector<8x128xi1> to vector<8x128xi32>
    %29 = arith.sitofp %28 : vector<8x128xi32> to vector<8x128xf32>
    %30 = arith.addf %23, %29 : vector<8x128xf32>
    %31 = vector.extract_strided_slice %0 {offsets = [0, 4], sizes = [8, 1], strides = [1, 1]} : vector<8x16xi32> to vector<8x1xi32>
    %32 = vector.broadcast %31 : vector<8x1xi32> to vector<8x128xi32>
    %33 = vector.broadcast %1 : vector<1x128xi32> to vector<8x128xi32>
    %34 = arith.cmpi eq, %32, %33 : vector<8x128xi32>
    %35 = arith.extui %34 : vector<8x128xi1> to vector<8x128xi32>
    %36 = arith.sitofp %35 : vector<8x128xi32> to vector<8x128xf32>
    %37 = arith.addf %30, %36 : vector<8x128xf32>
    %38 = vector.extract_strided_slice %0 {offsets = [0, 5], sizes = [8, 1], strides = [1, 1]} : vector<8x16xi32> to vector<8x1xi32>
    %39 = vector.broadcast %38 : vector<8x1xi32> to vector<8x128xi32>
    %40 = vector.broadcast %1 : vector<1x128xi32> to vector<8x128xi32>
    %41 = arith.cmpi eq, %39, %40 : vector<8x128xi32>
    %42 = arith.extui %41 : vector<8x128xi1> to vector<8x128xi32>
    %43 = arith.sitofp %42 : vector<8x128xi32> to vector<8x128xf32>
    %44 = arith.addf %37, %43 : vector<8x128xf32>
    %45 = vector.extract_strided_slice %0 {offsets = [0, 6], sizes = [8, 1], strides = [1, 1]} : vector<8x16xi32> to vector<8x1xi32>
    %46 = vector.broadcast %45 : vector<8x1xi32> to vector<8x128xi32>
    %47 = vector.broadcast %1 : vector<1x128xi32> to vector<8x128xi32>
    %48 = arith.cmpi eq, %46, %47 : vector<8x128xi32>
    %49 = arith.extui %48 : vector<8x128xi1> to vector<8x128xi32>
    %50 = arith.sitofp %49 : vector<8x128xi32> to vector<8x128xf32>
    %51 = arith.addf %44, %50 : vector<8x128xf32>
    %52 = vector.extract_strided_slice %0 {offsets = [0, 7], sizes = [8, 1], strides = [1, 1]} : vector<8x16xi32> to vector<8x1xi32>
    %53 = vector.broadcast %52 : vector<8x1xi32> to vector<8x128xi32>
    %54 = vector.broadcast %1 : vector<1x128xi32> to vector<8x128xi32>
    %55 = arith.cmpi eq, %53, %54 : vector<8x128xi32>
    %56 = arith.extui %55 : vector<8x128xi1> to vector<8x128xi32>
    %57 = arith.sitofp %56 : vector<8x128xi32> to vector<8x128xf32>
    %58 = arith.addf %51, %57 : vector<8x128xf32>
    %59 = vector.extract_strided_slice %0 {offsets = [0, 8], sizes = [8, 1], strides = [1, 1]} : vector<8x16xi32> to vector<8x1xi32>
    %60 = vector.broadcast %59 : vector<8x1xi32> to vector<8x128xi32>
    %61 = vector.broadcast %1 : vector<1x128xi32> to vector<8x128xi32>
    %62 = arith.cmpi eq, %60, %61 : vector<8x128xi32>
    %63 = arith.extui %62 : vector<8x128xi1> to vector<8x128xi32>
    %64 = arith.sitofp %63 : vector<8x128xi32> to vector<8x128xf32>
    %65 = arith.addf %58, %64 : vector<8x128xf32>
    %66 = vector.extract_strided_slice %0 {offsets = [0, 9], sizes = [8, 1], strides = [1, 1]} : vector<8x16xi32> to vector<8x1xi32>
    %67 = vector.broadcast %66 : vector<8x1xi32> to vector<8x128xi32>
    %68 = vector.broadcast %1 : vector<1x128xi32> to vector<8x128xi32>
    %69 = arith.cmpi eq, %67, %68 : vector<8x128xi32>
    %70 = arith.extui %69 : vector<8x128xi1> to vector<8x128xi32>
    %71 = arith.sitofp %70 : vector<8x128xi32> to vector<8x128xf32>
    %72 = arith.addf %65, %71 : vector<8x128xf32>
    %73 = vector.extract_strided_slice %0 {offsets = [0, 10], sizes = [8, 1], strides = [1, 1]} : vector<8x16xi32> to vector<8x1xi32>
    %74 = vector.broadcast %73 : vector<8x1xi32> to vector<8x128xi32>
    %75 = vector.broadcast %1 : vector<1x128xi32> to vector<8x128xi32>
    %76 = arith.cmpi eq, %74, %75 : vector<8x128xi32>
    %77 = arith.extui %76 : vector<8x128xi1> to vector<8x128xi32>
    %78 = arith.sitofp %77 : vector<8x128xi32> to vector<8x128xf32>
    %79 = arith.addf %72, %78 : vector<8x128xf32>
    %80 = vector.extract_strided_slice %0 {offsets = [0, 11], sizes = [8, 1], strides = [1, 1]} : vector<8x16xi32> to vector<8x1xi32>
    %81 = vector.broadcast %80 : vector<8x1xi32> to vector<8x128xi32>
    %82 = vector.broadcast %1 : vector<1x128xi32> to vector<8x128xi32>
    %83 = arith.cmpi eq, %81, %82 : vector<8x128xi32>
    %84 = arith.extui %83 : vector<8x128xi1> to vector<8x128xi32>
    %85 = arith.sitofp %84 : vector<8x128xi32> to vector<8x128xf32>
    %86 = arith.addf %79, %85 : vector<8x128xf32>
    %87 = vector.extract_strided_slice %0 {offsets = [0, 12], sizes = [8, 1], strides = [1, 1]} : vector<8x16xi32> to vector<8x1xi32>
    %88 = vector.broadcast %87 : vector<8x1xi32> to vector<8x128xi32>
    %89 = vector.broadcast %1 : vector<1x128xi32> to vector<8x128xi32>
    %90 = arith.cmpi eq, %88, %89 : vector<8x128xi32>
    %91 = arith.extui %90 : vector<8x128xi1> to vector<8x128xi32>
    %92 = arith.sitofp %91 : vector<8x128xi32> to vector<8x128xf32>
    %93 = arith.addf %86, %92 : vector<8x128xf32>
    %94 = vector.extract_strided_slice %0 {offsets = [0, 13], sizes = [8, 1], strides = [1, 1]} : vector<8x16xi32> to vector<8x1xi32>
    %95 = vector.broadcast %94 : vector<8x1xi32> to vector<8x128xi32>
    %96 = vector.broadcast %1 : vector<1x128xi32> to vector<8x128xi32>
    %97 = arith.cmpi eq, %95, %96 : vector<8x128xi32>
    %98 = arith.extui %97 : vector<8x128xi1> to vector<8x128xi32>
    %99 = arith.sitofp %98 : vector<8x128xi32> to vector<8x128xf32>
    %100 = arith.addf %93, %99 : vector<8x128xf32>
    %101 = vector.extract_strided_slice %0 {offsets = [0, 14], sizes = [8, 1], strides = [1, 1]} : vector<8x16xi32> to vector<8x1xi32>
    %102 = vector.broadcast %101 : vector<8x1xi32> to vector<8x128xi32>
    %103 = vector.broadcast %1 : vector<1x128xi32> to vector<8x128xi32>
    %104 = arith.cmpi eq, %102, %103 : vector<8x128xi32>
    %105 = arith.extui %104 : vector<8x128xi1> to vector<8x128xi32>
    %106 = arith.sitofp %105 : vector<8x128xi32> to vector<8x128xf32>
    %107 = arith.addf %100, %106 : vector<8x128xf32>
    %108 = vector.extract_strided_slice %0 {offsets = [0, 15], sizes = [8, 1], strides = [1, 1]} : vector<8x16xi32> to vector<8x1xi32>
    %109 = vector.broadcast %108 : vector<8x1xi32> to vector<8x128xi32>
    %110 = vector.broadcast %1 : vector<1x128xi32> to vector<8x128xi32>
    %111 = arith.cmpi eq, %109, %110 : vector<8x128xi32>
    %112 = arith.extui %111 : vector<8x128xi1> to vector<8x128xi32>
    %113 = arith.sitofp %112 : vector<8x128xi32> to vector<8x128xf32>
    %114 = arith.addf %107, %113 : vector<8x128xf32>
    %115 = arith.truncf %114 : vector<8x128xf32> to vector<8x128xbf16>
    %c0_1 = arith.constant 0 : index
    %c0_2 = arith.constant 0 : index
    %116 = vector.load %arg2[%c0_1, %c0_2] : memref<128x128xbf16, #tpu.memory_space<vmem>>, vector<128x128xbf16>
    %cst_3 = arith.constant dense<0.000000e+00> : vector<8x128xf32>
    %117 = tpu.matmul %115, %116, %cst_3 {dimension_numbers = #tpu.dot_dimension_numbers<[1], [0], [0], [1], [0, 0, 1, 1], [], []>} : vector<8x128xbf16>, vector<128x128xbf16>, vector<8x128xf32> -> vector<8x128xf32>
    %c0_4 = arith.constant 0 : index
    %c0_5 = arith.constant 0 : index
    %118 = vector.load %arg3[%c0_4, %c0_5] : memref<1x128xf32, #tpu.memory_space<vmem>>, vector<1x128xf32>
    %119 = vector.broadcast %118 : vector<1x128xf32> to vector<8x128xf32>
    %120 = arith.addf %117, %119 : vector<8x128xf32>
    %c0_6 = arith.constant 0 : index
    %c0_7 = arith.constant 0 : index
    %121 = vector.load %arg4[%c0_6, %c0_7] : memref<8x128xf32, #tpu.memory_space<vmem>>, vector<8x128xf32>
    tpu.vector_store %arg4[%c0_6, %c0_7], %120 {strides = array<i32>} : memref<8x128xf32, #tpu.memory_space<vmem>>, vector<8x128xf32>,
    return
  }
  func.func @transform_0(%arg0: i32) -> (i32, i32) {
    %c0_i32 = arith.constant 0 : i32
    %c0_i32_0 = arith.constant 0 : i32
    return %arg0, %c0_i32 : i32, i32
  }
  func.func @transform_1(%arg0: i32) -> (i32, i32) {
    %c0_i32 = arith.constant 0 : i32
    %c0_i32_0 = arith.constant 0 : i32
    %c0_i32_1 = arith.constant 0 : i32
    return %c0_i32, %c0_i32_0 : i32, i32
  }
  func.func @transform_2(%arg0: i32) -> (i32, i32) {
    %c0_i32 = arith.constant 0 : i32
    %c0_i32_0 = arith.constant 0 : i32
    %c0_i32_1 = arith.constant 0 : i32
    return %c0_i32, %c0_i32_0 : i32, i32
  }
  func.func @transform_3(%arg0: i32) -> (i32, i32) {
    %c0_i32 = arith.constant 0 : i32
    %c0_i32_0 = arith.constant 0 : i32
    return %arg0, %c0_i32 : i32, i32
  }
}

</mosaic_0001>

<llo_original>
// kernel: fasttext_forward.1
$region0: #{fasttext_forward.1}
  #allocation0 [shape = 'u32[]', space=smem, size = 0x4, offset = 0x4, fixed_abs, tag = 'smem constant byte address 0x4 - core index']
  #allocation1 [shape = 'u32[144,128]{1,0:T(1,128)}', space=vmem, size = 0x12000, scoped, tag = 'internal scratch']
  %s0 = inlined_call_operand.hbm [shape: s32[8,16], index: 0, kind: input, shape index: {}]
  %s1 = inlined_call_operand.hbm [shape: bf16[128,128], index: 1, kind: input, shape index: {}]
  %s2 = inlined_call_operand.vmem [shape: f32[1,128], index: 2, kind: input, shape index: {}]
  %s3 = inlined_call_operand.hbm [shape: f32[8,128], index: 3, kind: output, shape index: {}]
  %s4 = sld [smem:[#allocation0]]
  $region30: #{fasttext_forward.1} parent=0
    _
  %s6 = ssub.s32 1, %s4
  %s7 = scalar_select 0, %s6, %s4
  $region1: #{fasttext_forward.1} parent=0
    #allocation2 [shape = 'u8[4096]{0}', space=vmem, size = 0x1000, scoped, tag = 'input window, operand 0, single buffered']
    #allocation3 [shape = 's32[1]{0}', space=sflag, size = 0x4, scoped, tag = 'scoped memory for fasttext_forward.1']
    #allocation4 [shape = 's32[1]{0}', space=sflag, size = 0x4, scoped, tag = 'scoped memory for fasttext_forward.1']
    #allocation5 [shape = 'u8[32768]{0}', space=vmem, size = 0x8000, scoped, tag = 'input window, operand 1, single buffered']
    #allocation6 [shape = 's32[1]{0}', space=sflag, size = 0x4, scoped, tag = 'scoped memory for fasttext_forward.1']
    #allocation7 [shape = 'u8[4096]{0}', space=vmem, size = 0x1000, scoped, tag = 'output window, operand 0, single buffered']
    %8 = vsyncpa [#allocation3], 0
    %9 = vsyncpa [#allocation6], 0
    %10 = vsyncpa [#allocation4], 0
    // Predicated region
    $region2: #{fasttext_forward.1} parent=1 // pred_check
      _
    $region3: #{fasttext_forward.1} parent=1 // pred_check_branch
      %12 = sbr.rel (0) target = $region5
    $region4: #{fasttext_forward.1} parent=1 // pred_region
      %s14 = ssub.s32 128, 128
      %15 = vsyncadd [#allocation3], %s14
      %s17 = sshll.u32 [#allocation2], 4
      %s18 = int_to_ptr.vmem [resolvable:$true] %s17
      %20 = dma.hbm_to_vmem [thread:$0]  %s0, 128, %s18, [#allocation3]
    $region5: #{fasttext_forward.1} parent=1 // pred_fallthru
      _
    // Predicated region
    $region6: #{fasttext_forward.1} parent=1 // pred_check
      _
    $region7: #{fasttext_forward.1} parent=1 // pred_check_branch
      %22 = sbr.rel (0) target = $region9
    $region8: #{fasttext_forward.1} parent=1 // pred_region
      %s24 = ssub.s32 1024, 1024
      %25 = vsyncadd [#allocation6], %s24
      %s26 = sshll.u32 [#allocation5], 4
      %s27 = int_to_ptr.vmem [resolvable:$true] %s26
      %32 = dma.hbm_to_vmem [thread:$0]  %s1, 1024, %s27, [#allocation6], 64, 64, 4
    $region9: #{fasttext_forward.1} parent=1 // pred_fallthru
      _
    // Predicated region
    $region10: #{fasttext_forward.1} parent=1 // pred_check
      _
    $region11: #{fasttext_forward.1} parent=1 // pred_check_branch
      %34 = sbr.rel (0) target = $region13
    $region12: #{fasttext_forward.1} parent=1 // pred_region
      _
    $region13: #{fasttext_forward.1} parent=1 // pred_fallthru
      _
    // Predicated region
    $region14: #{fasttext_forward.1} parent=1 // pred_check
      _
    $region15: #{fasttext_forward.1} parent=1 // pred_check_branch
      %36 = sbr.rel (0) target = $region17
    $region16: #{fasttext_forward.1} parent=1 // pred_region
      %37 = dma.done [#allocation3], 128
    $region17: #{fasttext_forward.1} parent=1 // pred_fallthru
      _
    // Predicated region
    $region18: #{fasttext_forward.1} parent=1 // pred_check
      _
    $region19: #{fasttext_forward.1} parent=1 // pred_check_branch
      %39 = sbr.rel (0) target = $region21
    $region20: #{fasttext_forward.1} parent=1 // pred_region
      %40 = dma.done [#allocation6], 1024
    $region21: #{fasttext_forward.1} parent=1 // pred_fallthru
      _
    %v42 = vld [vmem:[#allocation2] sm:$0xff]
    %v43 = vlaneseq
    %v44 = vand.u32 %v43, 127
    %45 = vset.pattern.permute.xlu0 0
    %46 = vperm.xlu0 %45, %v42
    %v47 = vpop.permute.xlu0 %46
    %vm48 = vcmp.eq.s32.totalorder %v47, %v44
    %v49 = vsel %vm48, 1, 0
    %v50 = vcvt.s32.f32 %v49
    %v51 = vadd.f32 %v50, 0.0
    %52 = vset.pattern.permute.xlu0 1
    %53 = vperm.xlu0 %52, %v42
    %v54 = vpop.permute.xlu0 %53
    %vm55 = vcmp.eq.s32.totalorder %v54, %v44
    %v56 = vsel %vm55, 1, 0
    %v57 = vcvt.s32.f32 %v56
    %v58 = vadd.f32 %v51, %v57
    %59 = vset.pattern.permute.xlu0 2
    %60 = vperm.xlu0 %59, %v42
    %v61 = vpop.permute.xlu0 %60
    %vm62 = vcmp.eq.s32.totalorder %v61, %v44
    %v63 = vsel %vm62, 1, 0
    %v64 = vcvt.s32.f32 %v63
    %v65 = vadd.f32 %v58, %v64
    %66 = vset.pattern.permute.xlu0 3
    %67 = vperm.xlu0 %66, %v42
    %v68 = vpop.permute.xlu0 %67
    %vm69 = vcmp.eq.s32.totalorder %v68, %v44
    %v70 = vsel %vm69, 1, 0
    %v71 = vcvt.s32.f32 %v70
    %v72 = vadd.f32 %v65, %v71
    %73 = vset.pattern.permute.xlu0 4
    %74 = vperm.xlu0 %73, %v42
    %v75 = vpop.permute.xlu0 %74
    %vm76 = vcmp.eq.s32.totalorder %v75, %v44
    %v77 = vsel %vm76, 1, 0
    %v78 = vcvt.s32.f32 %v77
    %v79 = vadd.f32 %v72, %v78
    %80 = vset.pattern.permute.xlu0 5
    %81 = vperm.xlu0 %80, %v42
    %v82 = vpop.permute.xlu0 %81
    %vm83 = vcmp.eq.s32.totalorder %v82, %v44
    %v84 = vsel %vm83, 1, 0
    %v85 = vcvt.s32.f32 %v84
    %v86 = vadd.f32 %v79, %v85
    %87 = vset.pattern.permute.xlu0 6
    %88 = vperm.xlu0 %87, %v42
    %v89 = vpop.permute.xlu0 %88
    %vm90 = vcmp.eq.s32.totalorder %v89, %v44
    %v91 = vsel %vm90, 1, 0
    %v92 = vcvt.s32.f32 %v91
    %v93 = vadd.f32 %v86, %v92
    %94 = vset.pattern.permute.xlu0 7
    %95 = vperm.xlu0 %94, %v42
    %v96 = vpop.permute.xlu0 %95
    %vm97 = vcmp.eq.s32.totalorder %v96, %v44
    %v98 = vsel %vm97, 1, 0
    %v99 = vcvt.s32.f32 %v98
    %v100 = vadd.f32 %v93, %v99
    %101 = vset.pattern.permute.xlu0 8
    %102 = vperm.xlu0 %101, %v42
    %v103 = vpop.permute.xlu0 %102
    %vm104 = vcmp.eq.s32.totalorder %v103, %v44
    %v105 = vsel %vm104, 1, 0
    %v106 = vcvt.s32.f32 %v105
    %v107 = vadd.f32 %v100, %v106
    %108 = vset.pattern.permute.xlu0 9
    %109 = vperm.xlu0 %108, %v42
    %v110 = vpop.permute.xlu0 %109
    %vm111 = vcmp.eq.s32.totalorder %v110, %v44
    %v112 = vsel %vm111, 1, 0
    %v113 = vcvt.s32.f32 %v112
    %v114 = vadd.f32 %v107, %v113
    %115 = vset.pattern.permute.xlu0 10
    %116 = vperm.xlu0 %115, %v42
    %v117 = vpop.permute.xlu0 %116
    %vm118 = vcmp.eq.s32.totalorder %v117, %v44
    %v119 = vsel %vm118, 1, 0
    %v120 = vcvt.s32.f32 %v119
    %v121 = vadd.f32 %v114, %v120
    %122 = vset.pattern.permute.xlu0 11
    %123 = vperm.xlu0 %122, %v42
    %v124 = vpop.permute.xlu0 %123
    %vm125 = vcmp.eq.s32.totalorder %v124, %v44
    %v126 = vsel %vm125, 1, 0
    %v127 = vcvt.s32.f32 %v126
    %v128 = vadd.f32 %v121, %v127
    %129 = vset.pattern.permute.xlu0 12
    %130 = vperm.xlu0 %129, %v42
    %v131 = vpop.permute.xlu0 %130
    %vm132 = vcmp.eq.s32.totalorder %v131, %v44
    %v133 = vsel %vm132, 1, 0
    %v134 = vcvt.s32.f32 %v133
    %v135 = vadd.f32 %v128, %v134
    %136 = vset.pattern.permute.xlu0 13
    %137 = vperm.xlu0 %136, %v42
    %v138 = vpop.permute.xlu0 %137
    %vm139 = vcmp.eq.s32.totalorder %v138, %v44
    %v140 = vsel %vm139, 1, 0
    %v141 = vcvt.s32.f32 %v140
    %v142 = vadd.f32 %v135, %v141
    %143 = vset.pattern.permute.xlu0 14
    %144 = vperm.xlu0 %143, %v42
    %v145 = vpop.permute.xlu0 %144
    %vm146 = vcmp.eq.s32.totalorder %v145, %v44
    %v147 = vsel %vm146, 1, 0
    %v148 = vcvt.s32.f32 %v147
    %v149 = vadd.f32 %v142, %v148
    %150 = vset.pattern.permute.xlu0 15
    %151 = vperm.xlu0 %150, %v42
    %v152 = vpop.permute.xlu0 %151
    %vm153 = vcmp.eq.s32.totalorder %v152, %v44
    %v154 = vsel %vm153, 1, 0
    %v155 = vcvt.s32.f32 %v154
    %v156 = vadd.f32 %v149, %v155
    %v157 = vpack.c.bf16 %v156, %v156
    %v158 = vld [vmem:[#allocation5] sm:$0xf]
    %v159 = vld [vmem:[#allocation5 + $0x4] sm:$0xf]
    %v160 = vld [vmem:[#allocation5 + $0x8] sm:$0xf]
    %v161 = vld [vmem:[#allocation5 + $0xc] sm:$0xf]
    %v162 = vld [vmem:[#allocation5 + $0x10] sm:$0xf]
    %v163 = vld [vmem:[#allocation5 + $0x14] sm:$0xf]
    %v164 = vld [vmem:[#allocation5 + $0x18] sm:$0xf]
    %v165 = vld [vmem:[#allocation5 + $0x1c] sm:$0xf]
    %v166 = vld [vmem:[#allocation5 + $0x20] sm:$0xf]
    %v167 = vld [vmem:[#allocation5 + $0x24] sm:$0xf]
    %v168 = vld [vmem:[#allocation5 + $0x28] sm:$0xf]
    %v169 = vld [vmem:[#allocation5 + $0x2c] sm:$0xf]
    %v170 = vld [vmem:[#allocation5 + $0x30] sm:$0xf]
    %v171 = vld [vmem:[#allocation5 + $0x34] sm:$0xf]
    %v172 = vld [vmem:[#allocation5 + $0x38] sm:$0xf]
    %v173 = vld [vmem:[#allocation5 + $0x3c] sm:$0xf]
    %v174 = vld [vmem:[%s2] sm:$0x1]
    %v176 = vlaneseq
    %v177 = vshrl.u32 %v176, 7
    %v178 = vsub.s32 0, %v177
    %v179 = vrot.slane %v174, %v178
    %v197 = vunpack.c.l.b16 %v158
    %v198 = vunpack.c.l.b16 %v159
    %v199 = vunpack.c.l.b16 %v160
    %v200 = vunpack.c.l.b16 %v161
    %v201 = vunpack.c.l.b16 %v162
    %v202 = vunpack.c.l.b16 %v163
    %v203 = vunpack.c.l.b16 %v164
    %v204 = vunpack.c.l.b16 %v165
    %v205 = vunpack.c.l.b16 %v166
    %v206 = vunpack.c.l.b16 %v167
    %v207 = vunpack.c.l.b16 %v168
    %v208 = vunpack.c.l.b16 %v169
    %v209 = vunpack.c.l.b16 %v170
    %v210 = vunpack.c.l.b16 %v171
    %v211 = vunpack.c.l.b16 %v172
    %v212 = vunpack.c.l.b16 %v173
    %v213 = vpack.c.b16 %v198, %v197
    %v214 = vpack.c.b16 %v200, %v199
    %v215 = vpack.c.b16 %v202, %v201
    %v216 = vpack.c.b16 %v204, %v203
    %v217 = vpack.c.b16 %v206, %v205
    %v218 = vpack.c.b16 %v208, %v207
    %v219 = vpack.c.b16 %v210, %v209
    %v220 = vpack.c.b16 %v212, %v211
    %229 = vmatprep.subr.bf16.mxu0 0
    %230 = vmatpush1.bf16.msra.mxu0 %v220
    %231 = vmatprep.subr.bf16.mxu0 0
    %232 = vmatpush1.bf16.msra.mxu0 %v219
    %233 = vmatprep.subr.bf16.mxu0 0
    %234 = vmatpush1.bf16.msra.mxu0 %v218
    %235 = vmatprep.subr.bf16.mxu0 0
    %236 = vmatpush1.bf16.msra.mxu0 %v217
    %237 = vmatprep.subr.bf16.mxu0 0
    %238 = vmatpush1.bf16.msra.mxu0 %v216
    %239 = vmatprep.subr.bf16.mxu0 0
    %240 = vmatpush1.bf16.msra.mxu0 %v215
    %241 = vmatprep.subr.bf16.mxu0 0
    %242 = vmatpush1.bf16.msra.mxu0 %v214
    %243 = vmatprep.subr.bf16.mxu0 0
    %244 = vmatpush1.bf16.msra.mxu0 %v213
    %245 = vmatprep.subr.bf16.mxu0 0
    %246 = vmatpush2.bf16.msra.mxu0 0
    %247 = vmatprep.subr.bf16.mxu0 0
    %248 = vmatpush2.bf16.msra.mxu0 0
    %249 = vmatprep.subr.bf16.mxu0 0
    %250 = vmatpush2.bf16.msra.mxu0 0
    %251 = vmatprep.subr.bf16.mxu0 0
    %252 = vmatpush2.bf16.msra.mxu0 0
    %253 = vmatprep.subr.bf16.mxu0 0
    %254 = vmatpush2.bf16.msra.mxu0 0
    %255 = vmatprep.subr.bf16.mxu0 0
    %256 = vmatpush2.bf16.msra.mxu0 0
    %257 = vmatprep.subr.bf16.mxu0 0
    %258 = vmatpush2.bf16.msra.mxu0 0
    %259 = vmatprep.subr.bf16.mxu0 0
    %260 = vmatpush2.bf16.msra.mxu0 0
    %261 = vmatprep.mubr.bf16.mxu0 0
    %262 = vmatmul.mubr.bf16.gmra.mxu0 %v157
    %v263 = vpop.f32.mrf.mxu0
    %v264 = vadd.f32 %v179, %v263
    %v265 = vpop.f32.mrf.mxu0
    %v266 = vpop.f32.mrf.mxu0
    %v267 = vpop.f32.mrf.mxu0
    %268 = vdwg.mxu0
    %269 = vst [vmem:[#allocation7] sm:$0xff] %v264
    // Predicated region
    $region22: #{fasttext_forward.1} parent=1 // pred_check
      _
    $region23: #{fasttext_forward.1} parent=1 // pred_check_branch
      %271 = sbr.rel (0) target = $region25
    $region24: #{fasttext_forward.1} parent=1 // pred_region
      %s273 = ssub.s32 128, 128
      %274 = vsyncadd [#allocation4], %s273
      %s276 = sshll.u32 [#allocation7], 4
      %s277 = int_to_ptr.vmem [resolvable:$true] %s276
      %279 = dma.vmem_to_hbm [thread:$0]  %s277, 128, %s3, [#allocation4]
    $region25: #{fasttext_forward.1} parent=1 // pred_fallthru
      _
    // Predicated region
    $region26: #{fasttext_forward.1} parent=1 // pred_check
      _
    $region27: #{fasttext_forward.1} parent=1 // pred_check_branch
      %281 = sbr.rel (0) target = $region29
    $region28: #{fasttext_forward.1} parent=1 // pred_region
      %282 = dma.done [#allocation4], 128
    $region29: #{fasttext_forward.1} parent=1 // pred_fallthru
      _
    %283 = vsyncpa [#allocation3], 1
    %284 = vsyncpa [#allocation6], 1
    %285 = vsyncpa [#allocation4], 1

</llo_original>
